<compile_context>
chip_gen: v7x
topology: tpu7x:2x2x1
jax: 0.10.0
libtpu: 0.0.40
codegen_flags: <defaults>
</compile_context>

<pallas_src>
import functools

import jax
import jax.numpy as jnp
from jax.experimental import pallas as pl
from jax.experimental.pallas import tpu as pltpu

_LANES = 128

# Identity pad values: f(pad) == 0 for each mode, so padded elements (lane pad
# of a ragged level / packing row pad) contribute nothing even though they
# carry the level's 1/n weight.
_PAD_VALUE = {"G": 0.0, "real": 1.0, "fake": -1.0}


def _round_up(x, m):
    return ((x + m - 1) // m) * m


def _hinge(x, mode):
    if mode == "G":
        return -x
    if mode == "real":
        return jnp.maximum(1.0 - x, 0.0)
    return jnp.maximum(1.0 + x, 0.0)  # "fake"


def _fused_hinge_kernel(*refs, n_levels, n_bufs, chunks, num_slots, mode):
    """Single-invocation kernel (no grid).

    refs = [level_hbm_0..level_hbm_{n-1}, out, buf_0..buf_{b-1}, sem]

    `chunks` is a static tuple of
        (level_idx, row_start, n_rows, weight, buf_idx, is_last_chunk_of_level)
    The chunk loop is Python-unrolled (all slices static) and manually
    pipelined `num_slots` deep with async HBM->VMEM copies.
    """
    lvl_refs = refs[:n_levels]
    out_ref = refs[n_levels]
    bufs = refs[n_levels + 1:n_levels + 1 + n_bufs]
    sem = refs[n_levels + 1 + n_bufs]

    n_chunks = len(chunks)

    def dma(c, slot):
        li, r0, nr, _w, bi, _last = chunks[c]
        return pltpu.make_async_copy(
            lvl_refs[li].at[pl.ds(r0, nr), :],
            bufs[bi].at[slot, pl.ds(0, nr), :],
            sem.at[slot])

    # Prime the pipeline (num_slots - 1 chunks in flight).
    for c in range(min(num_slots - 1, n_chunks)):
        dma(c, c % num_slots).start()

    zero8 = jnp.zeros((8, _LANES), jnp.float32)
    zero1 = jnp.zeros((1, _LANES), jnp.float32)
    tot8, tot1 = zero8, zero1   # weighted totals across levels
    s8, s1 = zero8, zero1       # unweighted running sums of the current level

    for c in range(n_chunks):
        slot = c % num_slots
        dma(c, slot).wait()
        nxt = c + num_slots - 1
        if nxt < n_chunks:
            dma(nxt, nxt % num_slots).start()

        li, r0, nr, w, bi, last = chunks[c]
        # Cast on the vreg path; HBM bytes stay in the level's native dtype.
        x = bufs[bi][slot, :nr, :].astype(jnp.float32)
        v = _hinge(x, mode)
        if nr % 8 == 0:
            # (nr,128) -> (nr//8, 8, 128): pure vreg adds, no per-step XLU.
            s8 = s8 + v.reshape(nr // 8, 8, _LANES).sum(axis=0)
        else:
            # Short f32 tail (< 8 rows): one tiny sublane reduce.
            s1 = s1 + jnp.sum(v, axis=0, keepdims=True)
        if last:
            wf = jnp.float32(w)
            tot8 = tot8 + wf * s8
            tot1 = tot1 + wf * s1
            s8, s1 = zero8, zero1

    # Single deferred sublane + cross-lane reduce.
    out_ref[...] = jnp.sum(tot8, keepdims=True) + jnp.sum(tot1, keepdims=True)


def multilevel_hinge_loss(inputs, for_real=True, for_G=False, *,
                          tile_rows=4096, num_slots=3):
    """JAX/Pallas equivalent of the PyTorch multilevel_hinge_loss.forward."""
    inputs = [jnp.asarray(x) for x in inputs]
    if len(inputs) == 0:
        return jnp.float32(0.0)

    if for_G:
        mode = "G"
    elif for_real:
        mode = "real"
    else:
        mode = "fake"
    pad_val = _PAD_VALUE[mode]

    # Chunk rows: multiple of 32 keeps every full chunk sublane-packing
    # aligned for f32 / bf16 / int8 alike.
    tile_rows = max(32, (int(tile_rows) // 32) * 32)
    num_slots = max(2, int(num_slots))

    levels = []       # (rows_i, 128) arrays in native dtype (views when aligned)
    level_meta = []   # (rows, 1/n, buf_idx)
    buf_dtypes = []   # one staging buffer per distinct input dtype
    max_rows = 0
    for x in inputs:
        n = int(x.size)
        dt = jnp.dtype(x.dtype)
        sub = max(8, 32 // dt.itemsize)        # sublane packing: 8 / 16 / 32
        rows = pl.cdiv(n, _LANES)
        if dt.itemsize < 4:
            # Keep all DMAs / VMEM slices packing-aligned for narrow dtypes.
            rows = _round_up(rows, sub)
        flat = x.reshape(-1)
        if rows * _LANES != n:
            # Only ragged levels pay a pad copy; f(pad_val) == 0 keeps them exact.
            flat = jnp.pad(flat, (0, rows * _LANES - n),
                           constant_values=pad_val)
        levels.append(flat.reshape(rows, _LANES))

        if dt not in buf_dtypes:
            buf_dtypes.append(dt)
        level_meta.append((rows, 1.0 / float(n), buf_dtypes.index(dt)))
        max_rows = max(max_rows, rows)

    # Don't allocate staging rows we will never use.
    tile_rows = min(tile_rows, _round_up(max_rows, 32))

    # Static chunk schedule (level-major, contiguous per level).
    chunks = []
    for li, (rows, w, bi) in enumerate(level_meta):
        r0 = 0
        while r0 < rows:
            nr = min(tile_rows, rows - r0)
            chunks.append((li, r0, nr, w, bi, r0 + nr >= rows))
            r0 += nr
    chunks = tuple(chunks)
    # TODO(synk): for extremely large levels (>100M elements) switch this
    # unrolled chunk loop to a lax.fori_loop inside the kernel to bound trace
    # size; irrelevant at GAN-discriminator-logit scales.

    d = max(2, min(num_slots, len(chunks)))

    scratch_shapes = [pltpu.VMEM((d, tile_rows, _LANES), dt)
                      for dt in buf_dtypes]
    scratch_shapes.append(pltpu.SemaphoreType.DMA((d,)))

    scratch_bytes = sum(d * tile_rows * _LANES * dt.itemsize
                        for dt in buf_dtypes)
    compiler_params = None
    if scratch_bytes > 12 * 1024 * 1024:
        # Stay within every generation's scoped-VMEM default unless we
        # actually need more (then ask for exactly what we use + headroom).
        compiler_params = pltpu.CompilerParams(
            vmem_limit_bytes=int(scratch_bytes + (8 << 20)))

    kernel = functools.partial(
        _fused_hinge_kernel, n_levels=len(levels), n_bufs=len(buf_dtypes),
        chunks=chunks, num_slots=d, mode=mode)

    # TODO(synk): on v7x, split the chunk list across the two TensorCores
    # (grid=(2,) "parallel", one partial (1,128) output per core summed in the
    # wrapper) to use both cores' HBM streaming; single-core v5e/v6e gain
    # nothing from it.
    out = pl.pallas_call(
        kernel,
        out_shape=jax.ShapeDtypeStruct((1, 1), jnp.float32),
        in_specs=[pl.BlockSpec(memory_space=pl.ANY) for _ in levels],
        scratch_shapes=scratch_shapes,
        compiler_params=compiler_params,
    )(*levels)
    return out[0, 0]


def _reference(inputs, for_real=True, for_G=False):
    loss = jnp.float32(0.0)
    for each in inputs:
        each = jnp.asarray(each).astype(jnp.float32)
        if for_G:
            loss_ = -jnp.mean(each)
        elif for_real:
            loss_ = jnp.mean(jnp.maximum(1.0 - each, 0.0))
        else:
            loss_ = jnp.mean(jnp.maximum(1.0 + each, 0.0))
        loss = loss + loss_
    return loss


if __name__ == "__main__":
    key = jax.random.PRNGKey(0)
    ks = jax.random.split(key, 6)
    # Multi-level discriminator logits (NCHW) at small shapes:
    #   - 128-aligned f32 levels (zero-copy reshape path),
    #   - a ragged level (2*3*5*7 = 210 -> lane pad),
    #   - a larger level (8192 elems) for the vreg-add reduction path,
    #   - a bf16 level (native-dtype staging buffer, in-kernel cast).
    inputs = [
        jax.random.normal(ks[0], (2, 1, 16, 16), dtype=jnp.float32),  # 512
        jax.random.normal(ks[1], (2, 1, 8, 8), dtype=jnp.float32),    # 128
        jax.random.normal(ks[2], (2, 4, 4, 4), dtype=jnp.float32),    # 128
        jax.random.normal(ks[3], (2, 3, 5, 7), dtype=jnp.float32),    # 210
        jax.random.normal(ks[4], (2, 4, 32, 32), dtype=jnp.float32),  # 8192
        jax.random.normal(ks[5], (2, 1, 32, 32),
                          dtype=jnp.float32).astype(jnp.bfloat16),    # 2048
    ]

    modes = ({"for_real": True, "for_G": False},
             {"for_real": False, "for_G": False},
             {"for_real": True, "for_G": True})

    ok = True
    # Default (large-tile) path: one chunk per level.
    for kwargs in modes:
        out = jax.block_until_ready(multilevel_hinge_loss(inputs, **kwargs))
        ref = jax.block_until_ready(_reference(inputs, **kwargs))
        if not jnp.allclose(out, ref, atol=1e-5, rtol=1e-5):
            ok = False

    # Small tiles force a multi-chunk, cross-level pipelined path with the
    # deeper (3-slot) staging buffer.
    for kwargs in modes:
        out = jax.block_until_ready(
            multilevel_hinge_loss(inputs, tile_rows=32, num_slots=3, **kwargs))
        ref = jax.block_until_ready(_reference(inputs, **kwargs))
        if not jnp.allclose(out, ref, atol=1e-5, rtol=1e-5):
            ok = False

    if ok:
        print("KERNEL_OK")
</pallas_src>

<mosaic_0001>
module attributes {stable_mosaic.version = 11 : i64} {
  func.func @_fused_hinge_kernel(%arg0: memref<4x128xf32, #tpu.memory_space<any>>, %arg1: memref<1x128xf32, #tpu.memory_space<any>>, %arg2: memref<1x128xf32, #tpu.memory_space<any>>, %arg3: memref<2x128xf32, #tpu.memory_space<any>>, %arg4: memref<64x128xf32, #tpu.memory_space<any>>, %arg5: memref<16x128xbf16, #tpu.memory_space<any>>, %arg6: memref<1x1xf32, #tpu.memory_space<vmem>>, %arg7: memref<3x64x128xf32, #tpu.memory_space<vmem>>, %arg8: memref<3x64x128xbf16, #tpu.memory_space<vmem>>, %arg9: memref<3x!tpu.dma_semaphore, #tpu.memory_space<semaphore_mem>>) attributes {dimension_semantics = [], scalar_prefetch = 0 : i64, scratch_operands = 3 : i64, tpu.core_type = #tpu.core_type<tc>} {
    %c0_i32 = arith.constant 0 : i32
    %c0_i32_0 = arith.constant 0 : i32
    %c0_i32_1 = arith.constant 0 : i32
    %c0_i32_2 = arith.constant 0 : i32
    %0 = tpu.memref_slice %arg0[%c0_i32_1, %c0_i32_2] : memref<4x128xf32, #tpu.memory_space<any>> -> memref<4x128xf32, #tpu.memory_space<any>>
    %c0_i32_3 = arith.constant 0 : i32
    %c0_i32_4 = arith.constant 0 : i32
    %1 = tpu.memref_slice %arg7[%c0_i32, %c0_i32_3, %c0_i32_4] : memref<3x64x128xf32, #tpu.memory_space<vmem>> -> memref<1x4x128xf32, #tpu.memory_space<vmem>>
    %2 = tpu.memref_squeeze %1 : memref<1x4x128xf32, #tpu.memory_space<vmem>> -> memref<4x128xf32, #tpu.memory_space<vmem>>
    %3 = tpu.memref_slice %arg9[%c0_i32_0] : memref<3x!tpu.dma_semaphore, #tpu.memory_space<semaphore_mem>> -> memref<1x!tpu.dma_semaphore, #tpu.memory_space<semaphore_mem>>
    %4 = tpu.memref_squeeze %3 : memref<1x!tpu.dma_semaphore, #tpu.memory_space<semaphore_mem>> -> memref<!tpu.dma_semaphore, #tpu.memory_space<semaphore_mem>>
    tpu.enqueue_dma source(%0 : memref<4x128xf32, #tpu.memory_space<any>>) target(%2 : memref<4x128xf32, #tpu.memory_space<vmem>>) target_semaphore(%4 : memref<!tpu.dma_semaphore, #tpu.memory_space<semaphore_mem>>)
    %c1_i32 = arith.constant 1 : i32
    %c1_i32_5 = arith.constant 1 : i32
    %c0_i32_6 = arith.constant 0 : i32
    %c0_i32_7 = arith.constant 0 : i32
    %5 = tpu.memref_slice %arg1[%c0_i32_6, %c0_i32_7] : memref<1x128xf32, #tpu.memory_space<any>> -> memref<1x128xf32, #tpu.memory_space<any>>
    %c0_i32_8 = arith.constant 0 : i32
    %c0_i32_9 = arith.constant 0 : i32
    %6 = tpu.memref_slice %arg7[%c1_i32, %c0_i32_8, %c0_i32_9] : memref<3x64x128xf32, #tpu.memory_space<vmem>> -> memref<1x1x128xf32, #tpu.memory_space<vmem>>
    %7 = tpu.memref_squeeze %6 : memref<1x1x128xf32, #tpu.memory_space<vmem>> -> memref<1x128xf32, #tpu.memory_space<vmem>>
    %8 = tpu.memref_slice %arg9[%c1_i32_5] : memref<3x!tpu.dma_semaphore, #tpu.memory_space<semaphore_mem>> -> memref<1x!tpu.dma_semaphore, #tpu.memory_space<semaphore_mem>>
    %9 = tpu.memref_squeeze %8 : memref<1x!tpu.dma_semaphore, #tpu.memory_space<semaphore_mem>> -> memref<!tpu.dma_semaphore, #tpu.memory_space<semaphore_mem>>
    tpu.enqueue_dma source(%5 : memref<1x128xf32, #tpu.memory_space<any>>) target(%7 : memref<1x128xf32, #tpu.memory_space<vmem>>) target_semaphore(%9 : memref<!tpu.dma_semaphore, #tpu.memory_space<semaphore_mem>>)
    %cst = arith.constant 0.000000e+00 : f32
    %10 = vector.broadcast %cst : f32 to vector<8x128xf32>
    %cst_10 = arith.constant 0.000000e+00 : f32
    %11 = vector.broadcast %cst_10 : f32 to vector<1x128xf32>
    %c0_i32_11 = arith.constant 0 : i32
    %c0_i32_12 = arith.constant 0 : i32
    %c0_i32_13 = arith.constant 0 : i32
    %c0_i32_14 = arith.constant 0 : i32
    %12 = tpu.memref_slice %arg0[%c0_i32_13, %c0_i32_14] : memref<4x128xf32, #tpu.memory_space<any>> -> memref<4x128xf32, #tpu.memory_space<any>>
    %c0_i32_15 = arith.constant 0 : i32
    %c0_i32_16 = arith.constant 0 : i32
    %13 = tpu.memref_slice %arg7[%c0_i32_11, %c0_i32_15, %c0_i32_16] : memref<3x64x128xf32, #tpu.memory_space<vmem>> -> memref<1x4x128xf32, #tpu.memory_space<vmem>>
    %14 = tpu.memref_squeeze %13 : memref<1x4x128xf32, #tpu.memory_space<vmem>> -> memref<4x128xf32, #tpu.memory_space<vmem>>
    %15 = tpu.memref_slice %arg9[%c0_i32_12] : memref<3x!tpu.dma_semaphore, #tpu.memory_space<semaphore_mem>> -> memref<1x!tpu.dma_semaphore, #tpu.memory_space<semaphore_mem>>
    %16 = tpu.memref_squeeze %15 : memref<1x!tpu.dma_semaphore, #tpu.memory_space<semaphore_mem>> -> memref<!tpu.dma_semaphore, #tpu.memory_space<semaphore_mem>>
    tpu.wait_dma2 semaphore(%16 : memref<!tpu.dma_semaphore, #tpu.memory_space<semaphore_mem>>) src(%12 : memref<4x128xf32, #tpu.memory_space<any>>) dst(%14 : memref<4x128xf32, #tpu.memory_space<vmem>>)
    %c2_i32 = arith.constant 2 : i32
    %c2_i32_17 = arith.constant 2 : i32
    %c0_i32_18 = arith.constant 0 : i32
    %c0_i32_19 = arith.constant 0 : i32
    %17 = tpu.memref_slice %arg2[%c0_i32_18, %c0_i32_19] : memref<1x128xf32, #tpu.memory_space<any>> -> memref<1x128xf32, #tpu.memory_space<any>>
    %c0_i32_20 = arith.constant 0 : i32
    %c0_i32_21 = arith.constant 0 : i32
    %18 = tpu.memref_slice %arg7[%c2_i32, %c0_i32_20, %c0_i32_21] : memref<3x64x128xf32, #tpu.memory_space<vmem>> -> memref<1x1x128xf32, #tpu.memory_space<vmem>>
    %19 = tpu.memref_squeeze %18 : memref<1x1x128xf32, #tpu.memory_space<vmem>> -> memref<1x128xf32, #tpu.memory_space<vmem>>
    %20 = tpu.memref_slice %arg9[%c2_i32_17] : memref<3x!tpu.dma_semaphore, #tpu.memory_space<semaphore_mem>> -> memref<1x!tpu.dma_semaphore, #tpu.memory_space<semaphore_mem>>
    %21 = tpu.memref_squeeze %20 : memref<1x!tpu.dma_semaphore, #tpu.memory_space<semaphore_mem>> -> memref<!tpu.dma_semaphore, #tpu.memory_space<semaphore_mem>>
    tpu.enqueue_dma source(%17 : memref<1x128xf32, #tpu.memory_space<any>>) target(%19 : memref<1x128xf32, #tpu.memory_space<vmem>>) target_semaphore(%21 : memref<!tpu.dma_semaphore, #tpu.memory_space<semaphore_mem>>)
    %c0 = arith.constant 0 : index
    %c0_22 = arith.constant 0 : index
    %c0_23 = arith.constant 0 : index
    %22 = vector.load %arg7[%c0, %c0_22, %c0_23] : memref<3x64x128xf32, #tpu.memory_space<vmem>>, vector<1x4x128xf32>
    %23 = vector.shape_cast %22 : vector<1x4x128xf32> to vector<4x128xf32>
    %cst_24 = arith.constant 1.000000e+00 : f32
    %24 = vector.broadcast %cst_24 : f32 to vector<4x128xf32>
    %25 = arith.subf %24, %23 : vector<4x128xf32>
    %cst_25 = arith.constant 0.000000e+00 : f32
    %26 = vector.broadcast %cst_25 : f32 to vector<4x128xf32>
    %27 = arith.maximumf %25, %26 : vector<4x128xf32>
    %cst_26 = arith.constant dense<0.000000e+00> : vector<128xf32>
    %28 = vector.multi_reduction <add>, %27, %cst_26 [0] : vector<4x128xf32> to vector<128xf32>
    %29 = vector.shape_cast %28 : vector<128xf32> to vector<1x128xf32>
    %30 = arith.addf %11, %29 : vector<1x128xf32>
    %cst_27 = arith.constant 0.001953125 : f32
    %31 = vector.broadcast %cst_27 : f32 to vector<8x128xf32>
    %32 = arith.mulf %31, %10 : vector<8x128xf32>
    %33 = arith.addf %10, %32 : vector<8x128xf32>
    %cst_28 = arith.constant 0.001953125 : f32
    %34 = vector.broadcast %cst_28 : f32 to vector<1x128xf32>
    %35 = arith.mulf %34, %30 : vector<1x128xf32>
    %36 = arith.addf %11, %35 : vector<1x128xf32>
    %c1_i32_29 = arith.constant 1 : i32
    %c1_i32_30 = arith.constant 1 : i32
    %c0_i32_31 = arith.constant 0 : i32
    %c0_i32_32 = arith.constant 0 : i32
    %37 = tpu.memref_slice %arg1[%c0_i32_31, %c0_i32_32] : memref<1x128xf32, #tpu.memory_space<any>> -> memref<1x128xf32, #tpu.memory_space<any>>
    %c0_i32_33 = arith.constant 0 : i32
    %c0_i32_34 = arith.constant 0 : i32
    %38 = tpu.memref_slice %arg7[%c1_i32_29, %c0_i32_33, %c0_i32_34] : memref<3x64x128xf32, #tpu.memory_space<vmem>> -> memref<1x1x128xf32, #tpu.memory_space<vmem>>
    %39 = tpu.memref_squeeze %38 : memref<1x1x128xf32, #tpu.memory_space<vmem>> -> memref<1x128xf32, #tpu.memory_space<vmem>>
    %40 = tpu.memref_slice %arg9[%c1_i32_30] : memref<3x!tpu.dma_semaphore, #tpu.memory_space<semaphore_mem>> -> memref<1x!tpu.dma_semaphore, #tpu.memory_space<semaphore_mem>>
    %41 = tpu.memref_squeeze %40 : memref<1x!tpu.dma_semaphore, #tpu.memory_space<semaphore_mem>> -> memref<!tpu.dma_semaphore, #tpu.memory_space<semaphore_mem>>
    tpu.wait_dma2 semaphore(%41 : memref<!tpu.dma_semaphore, #tpu.memory_space<semaphore_mem>>) src(%37 : memref<1x128xf32, #tpu.memory_space<any>>) dst(%39 : memref<1x128xf32, #tpu.memory_space<vmem>>)
    %c0_i32_35 = arith.constant 0 : i32
    %c0_i32_36 = arith.constant 0 : i32
    %c0_i32_37 = arith.constant 0 : i32
    %c0_i32_38 = arith.constant 0 : i32
    %42 = tpu.memref_slice %arg3[%c0_i32_37, %c0_i32_38] : memref<2x128xf32, #tpu.memory_space<any>> -> memref<2x128xf32, #tpu.memory_space<any>>
    %c0_i32_39 = arith.constant 0 : i32
    %c0_i32_40 = arith.constant 0 : i32
    %43 = tpu.memref_slice %arg7[%c0_i32_35, %c0_i32_39, %c0_i32_40] : memref<3x64x128xf32, #tpu.memory_space<vmem>> -> memref<1x2x128xf32, #tpu.memory_space<vmem>>
    %44 = tpu.memref_squeeze %43 : memref<1x2x128xf32, #tpu.memory_space<vmem>> -> memref<2x128xf32, #tpu.memory_space<vmem>>
    %45 = tpu.memref_slice %arg9[%c0_i32_36] : memref<3x!tpu.dma_semaphore, #tpu.memory_space<semaphore_mem>> -> memref<1x!tpu.dma_semaphore, #tpu.memory_space<semaphore_mem>>
    %46 = tpu.memref_squeeze %45 : memref<1x!tpu.dma_semaphore, #tpu.memory_space<semaphore_mem>> -> memref<!tpu.dma_semaphore, #tpu.memory_space<semaphore_mem>>
    tpu.enqueue_dma source(%42 : memref<2x128xf32, #tpu.memory_space<any>>) target(%44 : memref<2x128xf32, #tpu.memory_space<vmem>>) target_semaphore(%46 : memref<!tpu.dma_semaphore, #tpu.memory_space<semaphore_mem>>)
    %c1 = arith.constant 1 : index
    %c0_41 = arith.constant 0 : index
    %c0_42 = arith.constant 0 : index
    %47 = vector.load %arg7[%c1, %c0_41, %c0_42] : memref<3x64x128xf32, #tpu.memory_space<vmem>>, vector<1x1x128xf32>
    %48 = vector.shape_cast %47 : vector<1x1x128xf32> to vector<1x128xf32>
    %cst_43 = arith.constant 1.000000e+00 : f32
    %49 = vector.broadcast %cst_43 : f32 to vector<1x128xf32>
    %50 = arith.subf %49, %48 : vector<1x128xf32>
    %cst_44 = arith.constant 0.000000e+00 : f32
    %51 = vector.broadcast %cst_44 : f32 to vector<1x128xf32>
    %52 = arith.maximumf %50, %51 : vector<1x128xf32>
    %cst_45 = arith.constant dense<0.000000e+00> : vector<128xf32>
    %53 = vector.multi_reduction <add>, %52, %cst_45 [0] : vector<1x128xf32> to vector<128xf32>
    %54 = vector.shape_cast %53 : vector<128xf32> to vector<1x128xf32>
    %55 = arith.addf %11, %54 : vector<1x128xf32>
    %cst_46 = arith.constant 7.812500e-03 : f32
    %56 = vector.broadcast %cst_46 : f32 to vector<8x128xf32>
    %57 = arith.mulf %56, %10 : vector<8x128xf32>
    %58 = arith.addf %33, %57 : vector<8x128xf32>
    %cst_47 = arith.constant 7.812500e-03 : f32
    %59 = vector.broadcast %cst_47 : f32 to vector<1x128xf32>
    %60 = arith.mulf %59, %55 : vector<1x128xf32>
    %61 = arith.addf %36, %60 : vector<1x128xf32>
    %c2_i32_48 = arith.constant 2 : i32
    %c2_i32_49 = arith.constant 2 : i32
    %c0_i32_50 = arith.constant 0 : i32
    %c0_i32_51 = arith.constant 0 : i32
    %62 = tpu.memref_slice %arg2[%c0_i32_50, %c0_i32_51] : memref<1x128xf32, #tpu.memory_space<any>> -> memref<1x128xf32, #tpu.memory_space<any>>
    %c0_i32_52 = arith.constant 0 : i32
    %c0_i32_53 = arith.constant 0 : i32
    %63 = tpu.memref_slice %arg7[%c2_i32_48, %c0_i32_52, %c0_i32_53] : memref<3x64x128xf32, #tpu.memory_space<vmem>> -> memref<1x1x128xf32, #tpu.memory_space<vmem>>
    %64 = tpu.memref_squeeze %63 : memref<1x1x128xf32, #tpu.memory_space<vmem>> -> memref<1x128xf32, #tpu.memory_space<vmem>>
    %65 = tpu.memref_slice %arg9[%c2_i32_49] : memref<3x!tpu.dma_semaphore, #tpu.memory_space<semaphore_mem>> -> memref<1x!tpu.dma_semaphore, #tpu.memory_space<semaphore_mem>>
    %66 = tpu.memref_squeeze %65 : memref<1x!tpu.dma_semaphore, #tpu.memory_space<semaphore_mem>> -> memref<!tpu.dma_semaphore, #tpu.memory_space<semaphore_mem>>
    tpu.wait_dma2 semaphore(%66 : memref<!tpu.dma_semaphore, #tpu.memory_space<semaphore_mem>>) src(%62 : memref<1x128xf32, #tpu.memory_space<any>>) dst(%64 : memref<1x128xf32, #tpu.memory_space<vmem>>)
    %c1_i32_54 = arith.constant 1 : i32
    %c1_i32_55 = arith.constant 1 : i32
    %c0_i32_56 = arith.constant 0 : i32
    %c0_i32_57 = arith.constant 0 : i32
    %67 = tpu.memref_slice %arg4[%c0_i32_56, %c0_i32_57] : memref<64x128xf32, #tpu.memory_space<any>> -> memref<64x128xf32, #tpu.memory_space<any>>
    %c0_i32_58 = arith.constant 0 : i32
    %c0_i32_59 = arith.constant 0 : i32
    %68 = tpu.memref_slice %arg7[%c1_i32_54, %c0_i32_58, %c0_i32_59] : memref<3x64x128xf32, #tpu.memory_space<vmem>> -> memref<1x64x128xf32, #tpu.memory_space<vmem>>
    %69 = tpu.memref_squeeze %68 : memref<1x64x128xf32, #tpu.memory_space<vmem>> -> memref<64x128xf32, #tpu.memory_space<vmem>>
    %70 = tpu.memref_slice %arg9[%c1_i32_55] : memref<3x!tpu.dma_semaphore, #tpu.memory_space<semaphore_mem>> -> memref<1x!tpu.dma_semaphore, #tpu.memory_space<semaphore_mem>>
    %71 = tpu.memref_squeeze %70 : memref<1x!tpu.dma_semaphore, #tpu.memory_space<semaphore_mem>> -> memref<!tpu.dma_semaphore, #tpu.memory_space<semaphore_mem>>
    tpu.enqueue_dma source(%67 : memref<64x128xf32, #tpu.memory_space<any>>) target(%69 : memref<64x128xf32, #tpu.memory_space<vmem>>) target_semaphore(%71 : memref<!tpu.dma_semaphore, #tpu.memory_space<semaphore_mem>>)
    %c2 = arith.constant 2 : index
    %c0_60 = arith.constant 0 : index
    %c0_61 = arith.constant 0 : index
    %72 = vector.load %arg7[%c2, %c0_60, %c0_61] : memref<3x64x128xf32, #tpu.memory_space<vmem>>, vector<1x1x128xf32>
    %73 = vector.shape_cast %72 : vector<1x1x128xf32> to vector<1x128xf32>
    %cst_62 = arith.constant 1.000000e+00 : f32
    %74 = vector.broadcast %cst_62 : f32 to vector<1x128xf32>
    %75 = arith.subf %74, %73 : vector<1x128xf32>
    %cst_63 = arith.constant 0.000000e+00 : f32
    %76 = vector.broadcast %cst_63 : f32 to vector<1x128xf32>
    %77 = arith.maximumf %75, %76 : vector<1x128xf32>
    %cst_64 = arith.constant dense<0.000000e+00> : vector<128xf32>
    %78 = vector.multi_reduction <add>, %77, %cst_64 [0] : vector<1x128xf32> to vector<128xf32>
    %79 = vector.shape_cast %78 : vector<128xf32> to vector<1x128xf32>
    %80 = arith.addf %11, %79 : vector<1x128xf32>
    %cst_65 = arith.constant 7.812500e-03 : f32
    %81 = vector.broadcast %cst_65 : f32 to vector<8x128xf32>
    %82 = arith.mulf %81, %10 : vector<8x128xf32>
    %83 = arith.addf %58, %82 : vector<8x128xf32>
    %cst_66 = arith.constant 7.812500e-03 : f32
    %84 = vector.broadcast %cst_66 : f32 to vector<1x128xf32>
    %85 = arith.mulf %84, %80 : vector<1x128xf32>
    %86 = arith.addf %61, %85 : vector<1x128xf32>
    %c0_i32_67 = arith.constant 0 : i32
    %c0_i32_68 = arith.constant 0 : i32
    %c0_i32_69 = arith.constant 0 : i32
    %c0_i32_70 = arith.constant 0 : i32
    %87 = tpu.memref_slice %arg3[%c0_i32_69, %c0_i32_70] : memref<2x128xf32, #tpu.memory_space<any>> -> memref<2x128xf32, #tpu.memory_space<any>>
    %c0_i32_71 = arith.constant 0 : i32
    %c0_i32_72 = arith.constant 0 : i32
    %88 = tpu.memref_slice %arg7[%c0_i32_67, %c0_i32_71, %c0_i32_72] : memref<3x64x128xf32, #tpu.memory_space<vmem>> -> memref<1x2x128xf32, #tpu.memory_space<vmem>>
    %89 = tpu.memref_squeeze %88 : memref<1x2x128xf32, #tpu.memory_space<vmem>> -> memref<2x128xf32, #tpu.memory_space<vmem>>
    %90 = tpu.memref_slice %arg9[%c0_i32_68] : memref<3x!tpu.dma_semaphore, #tpu.memory_space<semaphore_mem>> -> memref<1x!tpu.dma_semaphore, #tpu.memory_space<semaphore_mem>>
    %91 = tpu.memref_squeeze %90 : memref<1x!tpu.dma_semaphore, #tpu.memory_space<semaphore_mem>> -> memref<!tpu.dma_semaphore, #tpu.memory_space<semaphore_mem>>
    tpu.wait_dma2 semaphore(%91 : memref<!tpu.dma_semaphore, #tpu.memory_space<semaphore_mem>>) src(%87 : memref<2x128xf32, #tpu.memory_space<any>>) dst(%89 : memref<2x128xf32, #tpu.memory_space<vmem>>)
    %c2_i32_73 = arith.constant 2 : i32
    %c2_i32_74 = arith.constant 2 : i32
    %c0_i32_75 = arith.constant 0 : i32
    %c0_i32_76 = arith.constant 0 : i32
    %92 = tpu.memref_slice %arg5[%c0_i32_75, %c0_i32_76] : memref<16x128xbf16, #tpu.memory_space<any>> -> memref<16x128xbf16, #tpu.memory_space<any>>
    %c0_i32_77 = arith.constant 0 : i32
    %c0_i32_78 = arith.constant 0 : i32
    %93 = tpu.memref_slice %arg8[%c2_i32_73, %c0_i32_77, %c0_i32_78] : memref<3x64x128xbf16, #tpu.memory_space<vmem>> -> memref<1x16x128xbf16, #tpu.memory_space<vmem>>
    %94 = tpu.memref_squeeze %93 : memref<1x16x128xbf16, #tpu.memory_space<vmem>> -> memref<16x128xbf16, #tpu.memory_space<vmem>>
    %95 = tpu.memref_slice %arg9[%c2_i32_74] : memref<3x!tpu.dma_semaphore, #tpu.memory_space<semaphore_mem>> -> memref<1x!tpu.dma_semaphore, #tpu.memory_space<semaphore_mem>>
    %96 = tpu.memref_squeeze %95 : memref<1x!tpu.dma_semaphore, #tpu.memory_space<semaphore_mem>> -> memref<!tpu.dma_semaphore, #tpu.memory_space<semaphore_mem>>
    tpu.enqueue_dma source(%92 : memref<16x128xbf16, #tpu.memory_space<any>>) target(%94 : memref<16x128xbf16, #tpu.memory_space<vmem>>) target_semaphore(%96 : memref<!tpu.dma_semaphore, #tpu.memory_space<semaphore_mem>>)
    %c0_79 = arith.constant 0 : index
    %c0_80 = arith.constant 0 : index
    %c0_81 = arith.constant 0 : index
    %97 = vector.load %arg7[%c0_79, %c0_80, %c0_81] : memref<3x64x128xf32, #tpu.memory_space<vmem>>, vector<1x2x128xf32>
    %98 = vector.shape_cast %97 : vector<1x2x128xf32> to vector<2x128xf32>
    %cst_82 = arith.constant 1.000000e+00 : f32
    %99 = vector.broadcast %cst_82 : f32 to vector<2x128xf32>
    %100 = arith.subf %99, %98 : vector<2x128xf32>
    %cst_83 = arith.constant 0.000000e+00 : f32
    %101 = vector.broadcast %cst_83 : f32 to vector<2x128xf32>
    %102 = arith.maximumf %100, %101 : vector<2x128xf32>
    %cst_84 = arith.constant dense<0.000000e+00> : vector<128xf32>
    %103 = vector.multi_reduction <add>, %102, %cst_84 [0] : vector<2x128xf32> to vector<128xf32>
    %104 = vector.shape_cast %103 : vector<128xf32> to vector<1x128xf32>
    %105 = arith.addf %11, %104 : vector<1x128xf32>
    %cst_85 = arith.constant 0.00476190494 : f32
    %106 = vector.broadcast %cst_85 : f32 to vector<8x128xf32>
    %107 = arith.mulf %106, %10 : vector<8x128xf32>
    %108 = arith.addf %83, %107 : vector<8x128xf32>
    %cst_86 = arith.constant 0.00476190494 : f32
    %109 = vector.broadcast %cst_86 : f32 to vector<1x128xf32>
    %110 = arith.mulf %109, %105 : vector<1x128xf32>
    %111 = arith.addf %86, %110 : vector<1x128xf32>
    %c1_i32_87 = arith.constant 1 : i32
    %c1_i32_88 = arith.constant 1 : i32
    %c0_i32_89 = arith.constant 0 : i32
    %c0_i32_90 = arith.constant 0 : i32
    %112 = tpu.memref_slice %arg4[%c0_i32_89, %c0_i32_90] : memref<64x128xf32, #tpu.memory_space<any>> -> memref<64x128xf32, #tpu.memory_space<any>>
    %c0_i32_91 = arith.constant 0 : i32
    %c0_i32_92 = arith.constant 0 : i32
    %113 = tpu.memref_slice %arg7[%c1_i32_87, %c0_i32_91, %c0_i32_92] : memref<3x64x128xf32, #tpu.memory_space<vmem>> -> memref<1x64x128xf32, #tpu.memory_space<vmem>>
    %114 = tpu.memref_squeeze %113 : memref<1x64x128xf32, #tpu.memory_space<vmem>> -> memref<64x128xf32, #tpu.memory_space<vmem>>
    %115 = tpu.memref_slice %arg9[%c1_i32_88] : memref<3x!tpu.dma_semaphore, #tpu.memory_space<semaphore_mem>> -> memref<1x!tpu.dma_semaphore, #tpu.memory_space<semaphore_mem>>
    %116 = tpu.memref_squeeze %115 : memref<1x!tpu.dma_semaphore, #tpu.memory_space<semaphore_mem>> -> memref<!tpu.dma_semaphore, #tpu.memory_space<semaphore_mem>>
    tpu.wait_dma2 semaphore(%116 : memref<!tpu.dma_semaphore, #tpu.memory_space<semaphore_mem>>) src(%112 : memref<64x128xf32, #tpu.memory_space<any>>) dst(%114 : memref<64x128xf32, #tpu.memory_space<vmem>>)
    %c1_93 = arith.constant 1 : index
    %c0_94 = arith.constant 0 : index
    %c0_95 = arith.constant 0 : index
    %117 = vector.load %arg7[%c1_93, %c0_94, %c0_95] : memref<3x64x128xf32, #tpu.memory_space<vmem>>, vector<1x64x128xf32>
    %118 = vector.shape_cast %117 : vector<1x64x128xf32> to vector<64x128xf32>
    %cst_96 = arith.constant 1.000000e+00 : f32
    %119 = vector.broadcast %cst_96 : f32 to vector<64x128xf32>
    %120 = arith.subf %119, %118 : vector<64x128xf32>
    %cst_97 = arith.constant 0.000000e+00 : f32
    %121 = vector.broadcast %cst_97 : f32 to vector<64x128xf32>
    %122 = arith.maximumf %120, %121 : vector<64x128xf32>
    %123 = vector.shape_cast %122 : vector<64x128xf32> to vector<8x8x128xf32>
    %cst_98 = arith.constant dense<0.000000e+00> : vector<8x128xf32>
    %124 = vector.multi_reduction <add>, %123, %cst_98 [0] : vector<8x8x128xf32> to vector<8x128xf32>
    %125 = arith.addf %10, %124 : vector<8x128xf32>
    %cst_99 = arith.constant 1.22070313E-4 : f32
    %126 = vector.broadcast %cst_99 : f32 to vector<8x128xf32>
    %127 = arith.mulf %126, %125 : vector<8x128xf32>
    %128 = arith.addf %108, %127 : vector<8x128xf32>
    %cst_100 = arith.constant 1.22070313E-4 : f32
    %129 = vector.broadcast %cst_100 : f32 to vector<1x128xf32>
    %130 = arith.mulf %129, %11 : vector<1x128xf32>
    %131 = arith.addf %111, %130 : vector<1x128xf32>
    %c2_i32_101 = arith.constant 2 : i32
    %c2_i32_102 = arith.constant 2 : i32
    %c0_i32_103 = arith.constant 0 : i32
    %c0_i32_104 = arith.constant 0 : i32
    %132 = tpu.memref_slice %arg5[%c0_i32_103, %c0_i32_104] : memref<16x128xbf16, #tpu.memory_space<any>> -> memref<16x128xbf16, #tpu.memory_space<any>>
    %c0_i32_105 = arith.constant 0 : i32
    %c0_i32_106 = arith.constant 0 : i32
    %133 = tpu.memref_slice %arg8[%c2_i32_101, %c0_i32_105, %c0_i32_106] : memref<3x64x128xbf16, #tpu.memory_space<vmem>> -> memref<1x16x128xbf16, #tpu.memory_space<vmem>>
    %134 = tpu.memref_squeeze %133 : memref<1x16x128xbf16, #tpu.memory_space<vmem>> -> memref<16x128xbf16, #tpu.memory_space<vmem>>
    %135 = tpu.memref_slice %arg9[%c2_i32_102] : memref<3x!tpu.dma_semaphore, #tpu.memory_space<semaphore_mem>> -> memref<1x!tpu.dma_semaphore, #tpu.memory_space<semaphore_mem>>
    %136 = tpu.memref_squeeze %135 : memref<1x!tpu.dma_semaphore, #tpu.memory_space<semaphore_mem>> -> memref<!tpu.dma_semaphore, #tpu.memory_space<semaphore_mem>>
    tpu.wait_dma2 semaphore(%136 : memref<!tpu.dma_semaphore, #tpu.memory_space<semaphore_mem>>) src(%132 : memref<16x128xbf16, #tpu.memory_space<any>>) dst(%134 : memref<16x128xbf16, #tpu.memory_space<vmem>>)
    %c2_107 = arith.constant 2 : index
    %c0_108 = arith.constant 0 : index
    %c0_109 = arith.constant 0 : index
    %137 = vector.load %arg8[%c2_107, %c0_108, %c0_109] : memref<3x64x128xbf16, #tpu.memory_space<vmem>>, vector<1x16x128xbf16>
    %138 = vector.shape_cast %137 : vector<1x16x128xbf16> to vector<16x128xbf16>
    %139 = arith.extf %138 : vector<16x128xbf16> to vector<16x128xf32>
    %cst_110 = arith.constant 1.000000e+00 : f32
    %140 = vector.broadcast %cst_110 : f32 to vector<16x128xf32>
    %141 = arith.subf %140, %139 : vector<16x128xf32>
    %cst_111 = arith.constant 0.000000e+00 : f32
    %142 = vector.broadcast %cst_111 : f32 to vector<16x128xf32>
    %143 = arith.maximumf %141, %142 : vector<16x128xf32>
    %144 = vector.shape_cast %143 : vector<16x128xf32> to vector<2x8x128xf32>
    %cst_112 = arith.constant dense<0.000000e+00> : vector<8x128xf32>
    %145 = vector.multi_reduction <add>, %144, %cst_112 [0] : vector<2x8x128xf32> to vector<8x128xf32>
    %146 = arith.addf %10, %145 : vector<8x128xf32>
    %cst_113 = arith.constant 4.8828125E-4 : f32
    %147 = vector.broadcast %cst_113 : f32 to vector<8x128xf32>
    %148 = arith.mulf %147, %146 : vector<8x128xf32>
    %149 = arith.addf %128, %148 : vector<8x128xf32>
    %cst_114 = arith.constant 4.8828125E-4 : f32
    %150 = vector.broadcast %cst_114 : f32 to vector<1x128xf32>
    %151 = arith.mulf %150, %11 : vector<1x128xf32>
    %152 = arith.addf %131, %151 : vector<1x128xf32>
    %153 = vector.shape_cast %149 : vector<8x128xf32> to vector<1x8x128xf32>
    %cst_115 = arith.constant dense<0.000000e+00> : vector<1xf32>
    %154 = vector.multi_reduction <add>, %153, %cst_115 [1, 2] : vector<1x8x128xf32> to vector<1xf32>
    %155 = vector.shape_cast %154 : vector<1xf32> to vector<1x1x1xf32>
    %156 = vector.extract %155[0, 0, 0] : f32 from vector<1x1x1xf32>
    %157 = vector.broadcast %156 : f32 to vector<1x1xf32>
    %158 = vector.shape_cast %152 : vector<1x128xf32> to vector<1x1x128xf32>
    %cst_116 = arith.constant dense<0.000000e+00> : vector<1xf32>
    %159 = vector.multi_reduction <add>, %158, %cst_116 [1, 2] : vector<1x1x128xf32> to vector<1xf32>
    %160 = vector.shape_cast %159 : vector<1xf32> to vector<1x1x1xf32>
    %161 = vector.extract %160[0, 0, 0] : f32 from vector<1x1x1xf32>
    %162 = vector.broadcast %161 : f32 to vector<1x1xf32>
    %163 = arith.addf %157, %162 : vector<1x1xf32>
    %c0_117 = arith.constant 0 : index
    %c0_118 = arith.constant 0 : index
    %164 = vector.load %arg6[%c0_117, %c0_118] : memref<1x1xf32, #tpu.memory_space<vmem>>, vector<1x1xf32>
    tpu.vector_store %arg6[%c0_117, %c0_118], %163 {strides = array<i32>} : memref<1x1xf32, #tpu.memory_space<vmem>>, vector<1x1xf32>,
    return
  }
}

</mosaic_0001>

<llo_original>
// kernel: tpu_custom_call.1
$region0: #{tpu_custom_call.1}
  #allocation0 [shape = 'u32[]', space=smem, size = 0x4, offset = 0x4, fixed_abs, tag = 'smem constant byte address 0x4 - core index']
  #allocation1 [shape = 'u32[144,128]{1,0:T(1,128)}', space=vmem, size = 0x12000, scoped, tag = 'internal scratch']
  #allocation2 [shape = 'f32[3,64,128]{2,1,0:T(8,128)}', space=vmem, size = 0x18000, scoped, tag = 'scratch operand']
  #allocation3 [shape = 'bf16[3,64,128]{2,1,0:T(16,128)(2,1)}', space=vmem, size = 0xc000, scoped, tag = 'scratch operand']
  #allocation4 [shape = 's32[3]{0}', space=sflag, size = 0xc, scoped, tag = 'scratch operand']
  #allocation7 [shape = 's32[]', space=sflag, size = 0x4, offset = 0, fixed_abs, tag = 'sflag constant byte address 0x0 - dummy sync flag']
  #allocation8 [shape = 's32[]', space=sflag, size = 0x4, offset = 0, fixed_abs, tag = 'sflag constant byte address 0x0 - dummy sync flag']
  #allocation9 [shape = 'u32[]', space=smem, size = 0x4, offset = 0x44, fixed_abs, tag = 'smem constant byte address 0x44 - assertion arg 0']
  #allocation10 [shape = 'u32[]', space=smem, size = 0x4, offset = 0x48, fixed_abs, tag = 'smem constant byte address 0x48 - assertion arg 1']
  #allocation11 [shape = 's32[]', space=sflag, size = 0x4, offset = 0, fixed_abs, tag = 'sflag constant byte address 0x0 - dummy sync flag']
  #allocation12 [shape = 's32[]', space=sflag, size = 0x4, offset = 0, fixed_abs, tag = 'sflag constant byte address 0x0 - dummy sync flag']
  #allocation13 [shape = 's32[]', space=sflag, size = 0x4, offset = 0, fixed_abs, tag = 'sflag constant byte address 0x0 - dummy sync flag']
  #allocation14 [shape = 's32[]', space=sflag, size = 0x4, offset = 0, fixed_abs, tag = 'sflag constant byte address 0x0 - dummy sync flag']
  #allocation15 [shape = 's32[]', space=sflag, size = 0x4, offset = 0, fixed_abs, tag = 'sflag constant byte address 0x0 - dummy sync flag']
  #allocation16 [shape = 's32[]', space=sflag, size = 0x4, offset = 0, fixed_abs, tag = 'sflag constant byte address 0x0 - dummy sync flag']
  %s0 = inlined_call_operand.hbm [shape: f32[4,128], index: 0, kind: input, shape index: {}]
  %s1 = inlined_call_operand.vmem [shape: f32[1,128], index: 1, kind: input, shape index: {}]
  %s2 = inlined_call_operand.vmem [shape: f32[1,128], index: 2, kind: input, shape index: {}]
  %s3 = inlined_call_operand.vmem [shape: f32[2,128], index: 3, kind: input, shape index: {}]
  %s4 = inlined_call_operand.hbm [shape: f32[64,128], index: 4, kind: input, shape index: {}]
  %s5 = inlined_call_operand.vmem [shape: bf16[16,128], index: 5, kind: input, shape index: {}]
  %s6 = inlined_call_operand.hbm [shape: f32[1,1], index: 6, kind: output, shape index: {}]
  %s7 = sld [smem:[#allocation0]]
  $region142: #{tpu_custom_call.1} parent=0
    _
  %s9 = ssub.s32 1, %s7
  %s10 = scalar_select 0, %s9, %s7
  $region1: #{tpu_custom_call.1} parent=0
    #allocation5 [shape = 'u8[512]{0}', space=vmem, size = 0x400, scoped, tag = 'output window, operand 0, single buffered']
    #allocation6 [shape = 's32[1]{0}', space=sflag, size = 0x4, scoped, tag = 'scoped memory for tpu_custom_call.1']
    %11 = vsyncpa [#allocation6], 0
    // Predicated region
    $region2: #{tpu_custom_call.1} parent=1 // pred_check
      _
    $region3: #{tpu_custom_call.1} parent=1 // pred_check_branch
      %13 = sbr.rel target = $region5
    $region4: #{tpu_custom_call.1} parent=1 // pred_region
      %14 = sst [smem:[#allocation9]] [#allocation8]
      %15 = sst [smem:[#allocation10]] [#allocation7]
    $region5: #{tpu_custom_call.1} parent=1 // pred_fallthru
      _
    %17 = shalt.err (0)
    %s19 = sshll.u32 [#allocation2], 4
    %s20 = int_to_ptr.vmem [resolvable:$true] %s19
    %22 = dma.hbm_to_vmem [thread:$0]  %s0, 64, %s20, [#allocation4]
    %s23 = scalar_lea.vmem [#allocation2], 64
    %s24 = scalar_lea.sflag [#allocation4], 1
    %p26 = scmp.lt.u32.totalorder 1, 8
    %p27 = pneg %p26
    // Predicated region
    $region6: #{tpu_custom_call.1} parent=1 // pred_check
      _
    $region7: #{tpu_custom_call.1} parent=1 // pred_check_branch
      %29 = sbr.rel (%p26) target = $region9
    $region8: #{tpu_custom_call.1} parent=1 // pred_region
      %s44 = sand.u32 1, 7
      %p45 = scmp.eq.s32.totalorder %s44, 0
      %p46 = pneg %p45
      // Predicated region
      $region21: #{tpu_custom_call.1} parent=8 // pred_check
        _
      $region22: #{tpu_custom_call.1} parent=8 // pred_check_branch
        %48 = sbr.rel (%p45) target = $region24
      $region23: #{tpu_custom_call.1} parent=8 // pred_region
        %s49 = sand.u32 1, 7
        %s50 = ssub.s32 1, %s49
        %s51 = scalar_lea.vmem %s1, %s50
        %s52 = ssub.s32 1, %s49
        %s53 = scalar_lea.vmem %s23, %s52 [#allocation2]
        %s54 = sshllo.u32 0, %s49
        loop: start=0, step=1, limit=1
        $region25: #{tpu_custom_call.1} parent=23 // loop_pre_header
          _
        $region26: #{tpu_custom_call.1} parent=23 // loop_header
          %s56 = sphi 0, %s60
          %p57 = scmp.ge.s32.totalorder %s56, 1
          %s61 = sphi %s51, %s51
          %s62 = sphi %s53, %s53
        $region27: #{tpu_custom_call.1} parent=23 // loop_header_branch
          %59 = sbr.rel (%p57) target = $region31
        $region28: #{tpu_custom_call.1} parent=23 // loop_body
          %v63 = vld [vmem:[%s61] sm:%s54]
          %64 = vst [vmem:[%s62] sm:%s54] %v63
        $region29: #{tpu_custom_call.1} parent=23 // loop_footer
          %s60 = sadd.s32 1, %s56
        $region30: #{tpu_custom_call.1} parent=23 // loop_footer_branch
          %55 = sbr.rel target = $region26
        $region31: #{tpu_custom_call.1} parent=23 // loop_exit
          _
      $region24: #{tpu_custom_call.1} parent=8 // pred_fallthru
        _
    $region9: #{tpu_custom_call.1} parent=1 // pred_fallthru
      _
    // Predicated region
    $region10: #{tpu_custom_call.1} parent=1 // pred_check
      %p30 = pneg %p26
    $region11: #{tpu_custom_call.1} parent=1 // pred_check_branch
      %32 = sbr.rel (%p30) target = $region13
    $region12: #{tpu_custom_call.1} parent=1 // pred_region
      %s33 = sshllo.u32 0, 1
      loop: start=0, step=1, limit=1
      $region14: #{tpu_custom_call.1} parent=12 // loop_pre_header
        _
      $region15: #{tpu_custom_call.1} parent=12 // loop_header
        %s35 = sphi 0, %s39
        %p36 = scmp.ge.s32.totalorder %s35, 1
        %s40 = sphi %s1, %s1
        %s41 = sphi %s23, %s23
      $region16: #{tpu_custom_call.1} parent=12 // loop_header_branch
        %38 = sbr.rel (%p36) target = $region20
      $region17: #{tpu_custom_call.1} parent=12 // loop_body
        %v42 = vld [vmem:[%s40] sm:%s33]
        %43 = vst [vmem:[%s41] sm:%s33] %v42
      $region18: #{tpu_custom_call.1} parent=12 // loop_footer
        %s39 = sadd.s32 1, %s35
      $region19: #{tpu_custom_call.1} parent=12 // loop_footer_branch
        %34 = sbr.rel target = $region15
      $region20: #{tpu_custom_call.1} parent=12 // loop_exit
        _
    $region13: #{tpu_custom_call.1} parent=1 // pred_fallthru
      _
    // Predicated region
    $region32: #{tpu_custom_call.1} parent=1 // pred_check
      _
    $region33: #{tpu_custom_call.1} parent=1 // pred_check_branch
      %67 = sbr.rel (0) target = $region35
    $region34: #{tpu_custom_call.1} parent=1 // pred_region
      %68 = vsyncadd %s24, 16
    $region35: #{tpu_custom_call.1} parent=1 // pred_fallthru
      _
    %s69 = smul.u32 4, 1
    %s70 = sshll.u32 %s69, 4
    %71 = dma.done [#allocation4], %s70
    %s72 = scalar_lea.vmem [#allocation2], 128
    %s73 = scalar_lea.sflag [#allocation4], 2
    %p75 = scmp.lt.u32.totalorder 1, 8
    %p76 = pneg %p75
    // Predicated region
    $region36: #{tpu_custom_call.1} parent=1 // pred_check
      _
    $region37: #{tpu_custom_call.1} parent=1 // pred_check_branch
      %78 = sbr.rel (%p75) target = $region39
    $region38: #{tpu_custom_call.1} parent=1 // pred_region
      %s93 = sand.u32 1, 7
      %p94 = scmp.eq.s32.totalorder %s93, 0
      %p95 = pneg %p94
      // Predicated region
      $region51: #{tpu_custom_call.1} parent=38 // pred_check
        _
      $region52: #{tpu_custom_call.1} parent=38 // pred_check_branch
        %97 = sbr.rel (%p94) target = $region54
      $region53: #{tpu_custom_call.1} parent=38 // pred_region
        %s98 = sand.u32 1, 7
        %s99 = ssub.s32 1, %s98
        %s100 = scalar_lea.vmem %s2, %s99
        %s101 = ssub.s32 1, %s98
        %s102 = scalar_lea.vmem %s72, %s101 [#allocation2]
        %s103 = sshllo.u32 0, %s98
        loop: start=0, step=1, limit=1
        $region55: #{tpu_custom_call.1} parent=53 // loop_pre_header
          _
        $region56: #{tpu_custom_call.1} parent=53 // loop_header
          %s105 = sphi 0, %s109
          %p106 = scmp.ge.s32.totalorder %s105, 1
          %s110 = sphi %s100, %s100
          %s111 = sphi %s102, %s102
        $region57: #{tpu_custom_call.1} parent=53 // loop_header_branch
          %108 = sbr.rel (%p106) target = $region61
        $region58: #{tpu_custom_call.1} parent=53 // loop_body
          %v112 = vld [vmem:[%s110] sm:%s103]
          %113 = vst [vmem:[%s111] sm:%s103] %v112
        $region59: #{tpu_custom_call.1} parent=53 // loop_footer
          %s109 = sadd.s32 1, %s105
        $region60: #{tpu_custom_call.1} parent=53 // loop_footer_branch
          %104 = sbr.rel target = $region56
        $region61: #{tpu_custom_call.1} parent=53 // loop_exit
          _
      $region54: #{tpu_custom_call.1} parent=38 // pred_fallthru
        _
    $region39: #{tpu_custom_call.1} parent=1 // pred_fallthru
      _
    // Predicated region
    $region40: #{tpu_custom_call.1} parent=1 // pred_check
      %p79 = pneg %p75
    $region41: #{tpu_custom_call.1} parent=1 // pred_check_branch
      %81 = sbr.rel (%p79) target = $region43
    $region42: #{tpu_custom_call.1} parent=1 // pred_region
      %s82 = sshllo.u32 0, 1
      loop: start=0, step=1, limit=1
      $region44: #{tpu_custom_call.1} parent=42 // loop_pre_header
        _
      $region45: #{tpu_custom_call.1} parent=42 // loop_header
        %s84 = sphi 0, %s88
        %p85 = scmp.ge.s32.totalorder %s84, 1
        %s89 = sphi %s2, %s2
        %s90 = sphi %s72, %s72
      $region46: #{tpu_custom_call.1} parent=42 // loop_header_branch
        %87 = sbr.rel (%p85) target = $region50
      $region47: #{tpu_custom_call.1} parent=42 // loop_body
        %v91 = vld [vmem:[%s89] sm:%s82]
        %92 = vst [vmem:[%s90] sm:%s82] %v91
      $region48: #{tpu_custom_call.1} parent=42 // loop_footer
        %s88 = sadd.s32 1, %s84
      $region49: #{tpu_custom_call.1} parent=42 // loop_footer_branch
        %83 = sbr.rel target = $region45
      $region50: #{tpu_custom_call.1} parent=42 // loop_exit
        _
    $region43: #{tpu_custom_call.1} parent=1 // pred_fallthru
      _
    // Predicated region
    $region62: #{tpu_custom_call.1} parent=1 // pred_check
      _
    $region63: #{tpu_custom_call.1} parent=1 // pred_check_branch
      %116 = sbr.rel (0) target = $region65
    $region64: #{tpu_custom_call.1} parent=1 // pred_region
      %117 = vsyncadd %s73, 16
    $region65: #{tpu_custom_call.1} parent=1 // pred_fallthru
      _
    %v118 = vld [vmem:[#allocation2] sm:$0xf]
    %v119 = vsub.f32 1.0, %v118
    %v120 = vmax.f32 %v119, 0.0
    %vm121 = vcmask 1043456
    %v122 = vsel %vm121, %v120, 0.0
    %v123 = vrot.slane %v122, 4
    %v124 = vadd.f32 %v122, %v123
    %v125 = vrot.slane %v124, 2
    %v126 = vadd.f32 %v124, %v125
    %v127 = vrot.slane %v126, 1
    %v128 = vadd.f32 %v126, %v127
    %v129 = vadd.f32 %v128, 0.0
    %v130 = vmul.f32 %v129, 0.001953125
    %v131 = vadd.f32 %v130, 0.0
    %s132 = smul.u32 1, 1
    %s133 = sshll.u32 %s132, 4
    %134 = dma.done %s24, %s133
    %p136 = scmp.lt.u32.totalorder 2, 8
    %p137 = pneg %p136
    // Predicated region
    $region66: #{tpu_custom_call.1} parent=1 // pred_check
      _
    $region67: #{tpu_custom_call.1} parent=1 // pred_check_branch
      %139 = sbr.rel (%p136) target = $region69
    $region68: #{tpu_custom_call.1} parent=1 // pred_region
      %s154 = sand.u32 2, 7
      %p155 = scmp.eq.s32.totalorder %s154, 0
      %p156 = pneg %p155
      // Predicated region
      $region81: #{tpu_custom_call.1} parent=68 // pred_check
        _
      $region82: #{tpu_custom_call.1} parent=68 // pred_check_branch
        %158 = sbr.rel (%p155) target = $region84
      $region83: #{tpu_custom_call.1} parent=68 // pred_region
        %s159 = sand.u32 2, 7
        %s160 = ssub.s32 2, %s159
        %s161 = scalar_lea.vmem %s3, %s160
        %s162 = ssub.s32 2, %s159
        %s163 = scalar_lea.vmem [#allocation2], %s162
        %s164 = sshllo.u32 0, %s159
        loop: start=0, step=1, limit=1
        $region85: #{tpu_custom_call.1} parent=83 // loop_pre_header
          _
        $region86: #{tpu_custom_call.1} parent=83 // loop_header
          %s166 = sphi 0, %s170
          %p167 = scmp.ge.s32.totalorder %s166, 1
          %s171 = sphi %s161, %s161
          %s172 = sphi %s163, %s163
        $region87: #{tpu_custom_call.1} parent=83 // loop_header_branch
          %169 = sbr.rel (%p167) target = $region91
        $region88: #{tpu_custom_call.1} parent=83 // loop_body
          %v173 = vld [vmem:[%s171] sm:%s164]
          %174 = vst [vmem:[%s172] sm:%s164] %v173
        $region89: #{tpu_custom_call.1} parent=83 // loop_footer
          %s170 = sadd.s32 1, %s166
        $region90: #{tpu_custom_call.1} parent=83 // loop_footer_branch
          %165 = sbr.rel target = $region86
        $region91: #{tpu_custom_call.1} parent=83 // loop_exit
          _
      $region84: #{tpu_custom_call.1} parent=68 // pred_fallthru
        _
    $region69: #{tpu_custom_call.1} parent=1 // pred_fallthru
      _
    // Predicated region
    $region70: #{tpu_custom_call.1} parent=1 // pred_check
      %p140 = pneg %p136
    $region71: #{tpu_custom_call.1} parent=1 // pred_check_branch
      %142 = sbr.rel (%p140) target = $region73
    $region72: #{tpu_custom_call.1} parent=1 // pred_region
      %s143 = sshllo.u32 0, 2
      loop: start=0, step=1, limit=1
      $region74: #{tpu_custom_call.1} parent=72 // loop_pre_header
        _
      $region75: #{tpu_custom_call.1} parent=72 // loop_header
        %s145 = sphi 0, %s149
        %p146 = scmp.ge.s32.totalorder %s145, 1
        %s150 = sphi %s3, %s3
        %s151 = sphi [#allocation2], [#allocation2]
      $region76: #{tpu_custom_call.1} parent=72 // loop_header_branch
        %148 = sbr.rel (%p146) target = $region80
      $region77: #{tpu_custom_call.1} parent=72 // loop_body
        %v152 = vld [vmem:[%s150] sm:%s143]
        %153 = vst [vmem:[%s151] sm:%s143] %v152
      $region78: #{tpu_custom_call.1} parent=72 // loop_footer
        %s149 = sadd.s32 1, %s145
      $region79: #{tpu_custom_call.1} parent=72 // loop_footer_branch
        %144 = sbr.rel target = $region75
      $region80: #{tpu_custom_call.1} parent=72 // loop_exit
        _
    $region73: #{tpu_custom_call.1} parent=1 // pred_fallthru
      _
    // Predicated region
    $region92: #{tpu_custom_call.1} parent=1 // pred_check
      _
    $region93: #{tpu_custom_call.1} parent=1 // pred_check_branch
      %177 = sbr.rel (0) target = $region95
    $region94: #{tpu_custom_call.1} parent=1 // pred_region
      %178 = vsyncadd [#allocation4], 32
    $region95: #{tpu_custom_call.1} parent=1 // pred_fallthru
      _
    %v179 = vld [vmem:[%s23] sm:$0x1]
    %v180 = vsub.f32 1.0, %v179
    %v181 = vmax.f32 %v180, 0.0
    %v182 = vadd.f32 %v181, 0.0
    %v183 = vadd.f32 %v182, 0.0
    %v184 = vmul.f32 %v183, 0.0078125
    %v185 = vadd.f32 %v131, %v184
    %s186 = sshll.u32 %s132, 4
    %187 = dma.done %s73, %s186
    // Predicated region
    $region96: #{tpu_custom_call.1} parent=1 // pred_check
      _
    $region97: #{tpu_custom_call.1} parent=1 // pred_check_branch
      %189 = sbr.rel target = $region99
    $region98: #{tpu_custom_call.1} parent=1 // pred_region
      %190 = sst [smem:[#allocation9]] [#allocation15]
      %191 = sst [smem:[#allocation10]] [#allocation14]
    $region99: #{tpu_custom_call.1} parent=1 // pred_fallthru
      _
    %193 = shalt.err (0)
    %s195 = sshll.u32 %s23, 4
    %s196 = int_to_ptr.vmem [resolvable:$true] %s195
    %198 = dma.hbm_to_vmem [thread:$0]  %s4, 1024, %s196, %s24
    %v199 = vld [vmem:[%s72] sm:$0x1]
    %v200 = vsub.f32 1.0, %v199
    %v201 = vmax.f32 %v200, 0.0
    %v202 = vadd.f32 %v201, 0.0
    %v203 = vadd.f32 %v202, 0.0
    %v204 = vmul.f32 %v203, 0.0078125
    %v205 = vadd.f32 %v185, %v204
    %s206 = smul.u32 2, 1
    %s207 = sshll.u32 %s206, 4
    %208 = dma.done [#allocation4], %s207
    %s209 = scalar_lea.vmem [#allocation3], 64
    %p211 = scmp.lt.u32.totalorder 8, 8
    %p212 = pneg %p211
    // Predicated region
    $region100: #{tpu_custom_call.1} parent=1 // pred_check
      _
    $region101: #{tpu_custom_call.1} parent=1 // pred_check_branch
      %214 = sbr.rel (%p211) target = $region103
    $region102: #{tpu_custom_call.1} parent=1 // pred_region
      %s229 = sand.u32 8, 7
      %p230 = scmp.eq.s32.totalorder %s229, 0
      // Predicated region
      $region115: #{tpu_custom_call.1} parent=102 // pred_check
        %p231 = pneg %p230
      $region116: #{tpu_custom_call.1} parent=102 // pred_check_branch
        %233 = sbr.rel (%p231) target = $region118
      $region117: #{tpu_custom_call.1} parent=102 // pred_region
        loop: start=0, step=1, limit=1
        $region119: #{tpu_custom_call.1} parent=117 // loop_pre_header
          _
        $region120: #{tpu_custom_call.1} parent=117 // loop_header
          %s235 = sphi 0, %s239
          %p236 = scmp.ge.s32.totalorder %s235, 1
          %s240 = sphi %s5, %s5
          %s241 = sphi %s209, %s209
        $region121: #{tpu_custom_call.1} parent=117 // loop_header_branch
          %238 = sbr.rel (%p236) target = $region125
        $region122: #{tpu_custom_call.1} parent=117 // loop_body
          %v242 = vld [vmem:[%s240] sm:$0xff]
          %243 = vst [vmem:[%s241] sm:$0xff] %v242
        $region123: #{tpu_custom_call.1} parent=117 // loop_footer
          %s239 = sadd.s32 1, %s235
        $region124: #{tpu_custom_call.1} parent=117 // loop_footer_branch
          %234 = sbr.rel target = $region120
        $region125: #{tpu_custom_call.1} parent=117 // loop_exit
          _
      $region118: #{tpu_custom_call.1} parent=102 // pred_fallthru
        _
      %p244 = pneg %p230
      // Predicated region
      $region126: #{tpu_custom_call.1} parent=102 // pred_check
        _
      $region127: #{tpu_custom_call.1} parent=102 // pred_check_branch
        %246 = sbr.rel (%p230) target = $region129
      $region128: #{tpu_custom_call.1} parent=102 // pred_region
        %s247 = sand.u32 8, 7
      $region129: #{tpu_custom_call.1} parent=102 // pred_fallthru
        _
    $region103: #{tpu_custom_call.1} parent=1 // pred_fallthru
      _
    // Predicated region
    $region104: #{tpu_custom_call.1} parent=1 // pred_check
      %p215 = pneg %p211
    $region105: #{tpu_custom_call.1} parent=1 // pred_check_branch
      %217 = sbr.rel (%p215) target = $region107
    $region106: #{tpu_custom_call.1} parent=1 // pred_region
      %s218 = sshllo.u32 0, 8
      loop: start=0, step=1, limit=1
      $region108: #{tpu_custom_call.1} parent=106 // loop_pre_header
        _
      $region109: #{tpu_custom_call.1} parent=106 // loop_header
        %s220 = sphi 0, %s224
        %p221 = scmp.ge.s32.totalorder %s220, 1
        %s225 = sphi %s5, %s5
        %s226 = sphi %s209, %s209
      $region110: #{tpu_custom_call.1} parent=106 // loop_header_branch
        %223 = sbr.rel (%p221) target = $region114
      $region111: #{tpu_custom_call.1} parent=106 // loop_body
        %v227 = vld [vmem:[%s225] sm:%s218]
        %228 = vst [vmem:[%s226] sm:%s218] %v227
      $region112: #{tpu_custom_call.1} parent=106 // loop_footer
        %s224 = sadd.s32 1, %s220
      $region113: #{tpu_custom_call.1} parent=106 // loop_footer_branch
        %219 = sbr.rel target = $region109
      $region114: #{tpu_custom_call.1} parent=106 // loop_exit
        _
    $region107: #{tpu_custom_call.1} parent=1 // pred_fallthru
      _
    // Predicated region
    $region130: #{tpu_custom_call.1} parent=1 // pred_check
      _
    $region131: #{tpu_custom_call.1} parent=1 // pred_check_branch
      %250 = sbr.rel (0) target = $region133
    $region132: #{tpu_custom_call.1} parent=1 // pred_region
      %251 = vsyncadd %s73, 128
    $region133: #{tpu_custom_call.1} parent=1 // pred_fallthru
      _
    %v252 = vld [vmem:[#allocation2] sm:$0x3]
    %v253 = vsub.f32 1.0, %v252
    %v254 = vmax.f32 %v253, 0.0
    %vm255 = vcmask 1041408
    %v256 = vsel %vm255, %v254, 0.0
    %v257 = vrot.slane %v256, 4
    %v258 = vadd.f32 %v256, %v257
    %v259 = vrot.slane %v258, 2
    %v260 = vadd.f32 %v258, %v259
    %v261 = vrot.slane %v260, 1
    %v262 = vadd.f32 %v260, %v261
    %v263 = vadd.f32 %v262, 0.0
    %v264 = vmul.f32 %v263, 0.004761905
    %v265 = vadd.f32 %v205, %v264
    %s266 = smul.u32 64, 1
    %s267 = sshll.u32 %s266, 4
    %268 = dma.done %s24, %s267
    %v269 = vld [vmem:[%s23] sm:$0xff]
    %v270 = vld [vmem:[%s23 + $0x8] sm:$0xff]
    %v271 = vld [vmem:[%s23 + $0x10] sm:$0xff]
    %v272 = vld [vmem:[%s23 + $0x18] sm:$0xff]
    %v273 = vld [vmem:[%s23 + $0x20] sm:$0xff]
    %v274 = vld [vmem:[%s23 + $0x28] sm:$0xff]
    %v275 = vld [vmem:[%s23 + $0x30] sm:$0xff]
    %v276 = vld [vmem:[%s23 + $0x38] sm:$0xff]
    %v277 = vsub.f32 1.0, %v269
    %v278 = vsub.f32 1.0, %v270
    %v279 = vsub.f32 1.0, %v271
    %v280 = vsub.f32 1.0, %v272
    %v281 = vsub.f32 1.0, %v273
    %v282 = vsub.f32 1.0, %v274
    %v283 = vsub.f32 1.0, %v275
    %v284 = vsub.f32 1.0, %v276
    %v285 = vmax.f32 %v277, 0.0
    %v286 = vmax.f32 %v278, 0.0
    %v287 = vmax.f32 %v279, 0.0
    %v288 = vmax.f32 %v280, 0.0
    %v289 = vmax.f32 %v281, 0.0
    %v290 = vmax.f32 %v282, 0.0
    %v291 = vmax.f32 %v283, 0.0
    %v292 = vmax.f32 %v284, 0.0
    %v293 = vadd.f32 %v285, %v286
    %v294 = vadd.f32 %v293, %v287
    %v295 = vadd.f32 %v294, %v288
    %v296 = vadd.f32 %v295, %v289
    %v297 = vadd.f32 %v296, %v290
    %v298 = vadd.f32 %v297, %v291
    %v299 = vadd.f32 %v298, %v292
    %v300 = vadd.f32 %v299, 0.0
    %v301 = vmul.f32 %v300, 0.00012207031
    %v302 = vadd.f32 %v301, 0.0
    %v303 = vadd.f32 %v265, 0.0
    %s304 = smul.u32 4, 2
    %s305 = smul.u32 %s304, 1
    %s306 = sshll.u32 %s305, 4
    %307 = dma.done %s73, %s306
    %v308 = vld [vmem:[%s209] sm:$0xff]
    %v309 = vunpack.c.l.bf16 %v308
    %v310 = vunpack.c.h.bf16 %v308
    %v311 = vsub.f32 1.0, %v309
    %v312 = vsub.f32 1.0, %v310
    %v313 = vmax.f32 %v311, 0.0
    %v314 = vmax.f32 %v312, 0.0
    %v315 = vadd.f32 %v313, %v314
    %v316 = vadd.f32 %v315, 0.0
    %v317 = vmul.f32 %v316, 0.00048828125
    %v318 = vadd.f32 %v302, %v317
    %v319 = vadd.f32 %v303, 0.0
    %320 = vadd.xlane.f32.xlu0 %v318
    %v321 = vpop.xlane.xlu0 %320
    %v322 = vrot.slane %v321, 4
    %v323 = vadd.f32 %v321, %v322
    %v324 = vrot.slane %v323, 2
    %v325 = vadd.f32 %v323, %v324
    %v326 = vrot.slane %v325, 1
    %v327 = vadd.f32 %v325, %v326
    %s328 = vtos %v327
    %v329 = vstv %s328
    %vm330 = vcmask 1040384
    %v331 = vsel %vm330, %v319, 0.0
    %332 = vadd.xlane.f32.xlu0 %v331
    %v333 = vpop.xlane.xlu0 %332
    %v334 = vrot.slane %v333, 4
    %v335 = vadd.f32 %v333, %v334
    %v336 = vrot.slane %v335, 2
    %v337 = vadd.f32 %v335, %v336
    %v338 = vrot.slane %v337, 1
    %v339 = vadd.f32 %v337, %v338
    %s340 = vtos %v339
    %v341 = vstv %s340
    %v342 = vadd.f32 %v329, %v341
    %vm343 = vcmask 0
    %344 = vst.msk [vmem:[#allocation5] sm:$0x1] %vm343, %v342
    // Predicated region
    $region134: #{tpu_custom_call.1} parent=1 // pred_check
      _
    $region135: #{tpu_custom_call.1} parent=1 // pred_check_branch
      %346 = sbr.rel (0) target = $region137
    $region136: #{tpu_custom_call.1} parent=1 // pred_region
      %s348 = ssub.s32 16, 16
      %349 = vsyncadd [#allocation6], %s348
      %s351 = sshll.u32 [#allocation5], 4
      %s352 = int_to_ptr.vmem [resolvable:$true] %s351
      %354 = dma.vmem_to_hbm [thread:$0]  %s352, 16, %s6, [#allocation6]
    $region137: #{tpu_custom_call.1} parent=1 // pred_fallthru
      _
    // Predicated region
    $region138: #{tpu_custom_call.1} parent=1 // pred_check
      _
    $region139: #{tpu_custom_call.1} parent=1 // pred_check_branch
      %356 = sbr.rel (0) target = $region141
    $region140: #{tpu_custom_call.1} parent=1 // pred_region
      %357 = dma.done [#allocation6], 16
    $region141: #{tpu_custom_call.1} parent=1 // pred_fallthru
      _
    %358 = vsyncpa [#allocation6], 1
  %359 = vsyncmov [#allocation4]
  %s360 = vpop.sfrf %359
  %p361 = scmp.eq.s32.totalorder %s360, 0
  %p362 = pneg %p361
  %364 = shalt.err (%p362)
  %s365 = scalar_lea.sflag [#allocation4], 1
  %366 = vsyncmov %s365
  %s367 = vpop.sfrf %366
  %p368 = scmp.eq.s32.totalorder %s367, 0
  %p369 = pneg %p368
  %371 = shalt.err (%p369)
  %s372 = scalar_lea.sflag [#allocation4], 2
  %373 = vsyncmov %s372
  %s374 = vpop.sfrf %373
  %p375 = scmp.eq.s32.totalorder %s374, 0
  %p376 = pneg %p375
  %378 = shalt.err (%p376)

</llo_original>
